<compile_context>
chip_gen: v5e
topology: v5e:2x2
jax: 0.10.0
libtpu: 0.0.40
codegen_flags: <defaults>
</compile_context>

<pallas_src>
import functools
import math

import jax
import jax.numpy as jnp
from jax.experimental import pallas as pl
from jax.experimental.pallas import tpu as pltpu

_LOG_2PI = math.log(2.0 * math.pi)
_OUT_W = 128          # lane-dense packed-output width: [:A] = mu, [A] = log_prob


def _round_up(x, m):
    return (x + m - 1) // m * m


# ---------------------------------------------------------------------------
# Parameter packing: one [rows, hidden] f32 slab, 8-row-aligned sections.
# ---------------------------------------------------------------------------
def pack_params(params, obs_dim, hidden, action_dim):
    w1, b1, w2, b2, w3, b3, log_std = params
    o_w1 = 0
    o_w2 = o_w1 + _round_up(obs_dim, 8)
    o_w3 = o_w2 + _round_up(hidden, 8)
    o_vec = o_w3 + _round_up(hidden, 8)
    rows = o_vec + 8                      # b1, b2, b3, log_std in the last 8-row block
    slab = jnp.zeros((rows, hidden), jnp.float32)
    slab = slab.at[o_w1:o_w1 + obs_dim, :].set(w1.astype(jnp.float32))
    slab = slab.at[o_w2:o_w2 + hidden, :].set(w2.astype(jnp.float32))
    slab = slab.at[o_w3:o_w3 + hidden, :action_dim].set(w3.astype(jnp.float32))
    slab = slab.at[o_vec + 0, :].set(jnp.reshape(b1, (-1,)).astype(jnp.float32))
    slab = slab.at[o_vec + 1, :].set(jnp.reshape(b2, (-1,)).astype(jnp.float32))
    slab = slab.at[o_vec + 2, :action_dim].set(jnp.reshape(b3, (-1,)).astype(jnp.float32))
    slab = slab.at[o_vec + 3, :action_dim].set(jnp.reshape(log_std, (-1,)).astype(jnp.float32))
    offsets = {"w1": o_w1, "w2": o_w2, "w3": o_w3, "vec": o_vec}
    return slab, offsets


# ---------------------------------------------------------------------------
# Kernel: fc1 -> relu -> fc2 -> relu -> fc3 -> tanh -> mu ; Normal log_prob(action)
# ---------------------------------------------------------------------------
def _actor_kernel(state_ref, action_ref, params_ref, out_ref, *,
                  obs_dim, hidden, action_dim, off):
    f32, bf16 = jnp.float32, jnp.bfloat16

    # Static slices of the VMEM-resident parameter slab (no extra DMA streams).
    w1 = params_ref[off["w1"]:off["w1"] + obs_dim, :].astype(bf16)    # [obs, hid]
    w2 = params_ref[off["w2"]:off["w2"] + hidden, :].astype(bf16)     # [hid, hid]
    w3 = params_ref[off["w3"]:off["w3"] + hidden, :].astype(bf16)     # [hid, hid] (cols>=A zero)
    vec = params_ref[off["vec"]:off["vec"] + 8, :]                    # aligned 8-row load (f32)
    b1 = vec[0:1, :]                                                  # [1, hid]
    b2 = vec[1:2, :]
    b3 = vec[2:3, :]                                                  # cols >= A are zero
    log_std = vec[3:4, :action_dim]                                   # [1, A]

    # MLP: bf16 MXU operands, f32 accumulation; activation math in f32.
    x = state_ref[...].astype(bf16)
    h1 = jnp.maximum(jnp.dot(x, w1, preferred_element_type=f32) + b1, 0.0)
    h2 = jnp.maximum(jnp.dot(h1.astype(bf16), w2, preferred_element_type=f32) + b2, 0.0)
    mu_full = jnp.tanh(jnp.dot(h2.astype(bf16), w3, preferred_element_type=f32) + b3)
    mu = mu_full[:, :action_dim]                                      # [bt, A]

    # Normal(mu, exp(log_std)).log_prob(action).sum(-1), divide replaced by an
    # EUP exp(-log_std) + multiply.
    inv_std = jnp.exp(-log_std)
    z = (action_ref[...] - mu) * inv_std
    logp = jnp.sum(-0.5 * z * z - log_std - 0.5 * _LOG_2PI,
                   axis=-1, keepdims=True)                            # [bt, 1]

    # Single lane-dense (128-wide) output block: [:A] = mu, [A] = log_prob.
    out_ref[...] = jnp.zeros_like(out_ref)
    out_ref[:, 0:action_dim] = mu
    out_ref[:, action_dim:action_dim + 1] = logp


# ---------------------------------------------------------------------------
# Wrapper
# ---------------------------------------------------------------------------
def actor_forward(state, packed_params, action, *, offsets,
                  obs_dim, hidden, action_dim, batch_tile=256):
    """Fused actor forward. Returns (mu [B,A], std [B,A], log_prob [B])."""
    B = state.shape[0]
    bt = min(batch_tile, _round_up(B, 8))      # batch tile, multiple of 8
    Bp = _round_up(B, bt)                      # padded batch, multiple of bt
    if Bp != B:
        state = jnp.pad(state, ((0, Bp - B), (0, 0)))
        action = jnp.pad(action, ((0, Bp - B), (0, 0)))

    kernel = functools.partial(_actor_kernel, obs_dim=obs_dim, hidden=hidden,
                               action_dim=action_dim, off=offsets)

    out = pl.pallas_call(
        kernel,
        out_shape=jax.ShapeDtypeStruct((Bp, _OUT_W), jnp.float32),
        grid=(Bp // bt,),
        in_specs=[
            pl.BlockSpec((bt, obs_dim), lambda i: (i, 0)),           # state: tiled on batch
            pl.BlockSpec((bt, action_dim), lambda i: (i, 0)),        # action: tiled on batch
            pl.BlockSpec(packed_params.shape, lambda i: (0, 0)),     # params: VMEM-resident
        ],
        out_specs=pl.BlockSpec((bt, _OUT_W), lambda i: (i, 0)),
        compiler_params=pltpu.CompilerParams(
            dimension_semantics=("parallel",),   # shards batch across TCs on v7x
        ),
    )(state, action, packed_params)

    mu = out[:B, :action_dim]
    log_prob = out[:B, action_dim]
    log_std = packed_params[offsets["vec"] + 3, :action_dim]
    std = jnp.broadcast_to(jnp.exp(log_std), mu.shape)   # pure fn of log_std (no kernel writeback)
    return mu, std, log_prob


# ---------------------------------------------------------------------------
# Init + pure-JAX reference (mirrors the PyTorch semantics)
# ---------------------------------------------------------------------------
def init_params(key, obs_dim, hidden, action_dim):
    k1, k2, k3, k4, k5, k6 = jax.random.split(key, 6)
    s = 0.1
    w1 = s * jax.random.normal(k1, (obs_dim, hidden), jnp.float32)
    b1 = s * jax.random.normal(k2, (hidden,), jnp.float32)
    w2 = s * jax.random.normal(k3, (hidden, hidden), jnp.float32)
    b2 = s * jax.random.normal(k4, (hidden,), jnp.float32)
    w3 = s * jax.random.normal(k5, (hidden, action_dim), jnp.float32)
    b3 = s * jax.random.normal(k6, (action_dim,), jnp.float32)
    log_std = -0.5 * jnp.ones((action_dim,), jnp.float32)   # matches __init__
    return (w1, b1, w2, b2, w3, b3, log_std)


def reference_forward(state, params, action, *, mxu_dtype=jnp.float32):
    w1, b1, w2, b2, w3, b3, log_std = params
    mm = lambda a, w: jnp.dot(a.astype(mxu_dtype), w.astype(mxu_dtype),
                              preferred_element_type=jnp.float32)
    h1 = jnp.maximum(mm(state, w1) + b1, 0.0)
    h2 = jnp.maximum(mm(h1, w2) + b2, 0.0)
    mu = jnp.tanh(mm(h2, w3) + b3)
    std = jnp.exp(log_std)
    logp = (-0.5 * ((action - mu) / std) ** 2 - log_std - 0.5 * _LOG_2PI).sum(-1)
    return mu, jnp.broadcast_to(std, mu.shape), logp


if __name__ == "__main__":
    # Shapes consistent with the module: obs_dim=16, hidden=32, action_dim=4.
    # B=200 with batch_tile=64 exercises padding + a 4-step "parallel" batch grid.
    OBS, HID, ACT = 16, 32, 4
    B = 200

    key = jax.random.PRNGKey(0)
    k_state, k_action, k_params = jax.random.split(key, 3)
    state = jax.random.normal(k_state, (B, OBS), jnp.float32)
    action = jax.random.normal(k_action, (B, ACT), jnp.float32)
    params = init_params(k_params, OBS, HID, ACT)

    packed, offsets = pack_params(params, OBS, HID, ACT)

    fwd = jax.jit(functools.partial(actor_forward, offsets=offsets, obs_dim=OBS,
                                    hidden=HID, action_dim=ACT, batch_tile=64))
    mu, std, logp = fwd(state, packed, action)
    jax.block_until_ready((mu, std, logp))

    # Tight check vs a reference using the same bf16 MXU operands.
    mu_b, std_b, logp_b = reference_forward(state, params, action, mxu_dtype=jnp.bfloat16)
    assert jnp.allclose(mu, mu_b, atol=5e-4), "mu mismatch (bf16-matched ref)"
    assert jnp.allclose(logp, logp_b, atol=2e-3), "log_prob mismatch (bf16-matched ref)"

    # Looser sanity check vs the pure-f32 PyTorch-equivalent reference
    # (bf16 MXU operands introduce ~1e-3 level differences).
    mu_f, std_f, logp_f = reference_forward(state, params, action)
    assert jnp.allclose(std, std_f, atol=1e-6), "std mismatch"
    assert jnp.allclose(mu, mu_f, atol=2e-2), "mu mismatch (f32 ref)"
    assert jnp.allclose(logp, logp_f, atol=5e-2, rtol=5e-2), "log_prob mismatch (f32 ref)"

    # NOTE: the torch.distributions.Normal object itself (sampling, entropy, ...) is a
    # host-side construct; the kernel returns its sufficient statistics (mu, std) plus
    # the summed log_prob of the provided action.
    print("KERNEL_OK")
</pallas_src>

<mosaic_0001>
module attributes {stable_mosaic.version = 11 : i64} {
  func.func @_actor_kernel(%arg0: i32, %arg1: memref<64x16xf32, #tpu.memory_space<vmem>>, %arg2: memref<64x4xf32, #tpu.memory_space<vmem>>, %arg3: memref<88x32xf32, #tpu.memory_space<vmem>>, %arg4: memref<64x128xf32, #tpu.memory_space<vmem>>) attributes {dimension_semantics = [#tpu.dimension_semantics<parallel>], iteration_bounds = array<i64: 4>, scalar_prefetch = 0 : i64, scratch_operands = 0 : i64, tpu.core_type = #tpu.core_type<tc>, window_params = [{transform_indices = @transform_0, window_bounds = array<i64: 64, 16>}, {transform_indices = @transform_1, window_bounds = array<i64: 64, 4>}, {pipeline_mode = #tpu.pipeline_mode<synchronous>, transform_indices = @transform_2, window_bounds = array<i64: 88, 32>}, {transform_indices = @transform_3, window_bounds = array<i64: 64, 128>}]} {
    %c0 = arith.constant 0 : index
    %c0_0 = arith.constant 0 : index
    %0 = vector.load %arg3[%c0, %c0_0] : memref<88x32xf32, #tpu.memory_space<vmem>>, vector<16x32xf32>
    %1 = arith.truncf %0 : vector<16x32xf32> to vector<16x32xbf16>
    %c16 = arith.constant 16 : index
    %c0_1 = arith.constant 0 : index
    %2 = vector.load %arg3[%c16, %c0_1] : memref<88x32xf32, #tpu.memory_space<vmem>>, vector<32x32xf32>
    %3 = arith.truncf %2 : vector<32x32xf32> to vector<32x32xbf16>
    %c48 = arith.constant 48 : index
    %c0_2 = arith.constant 0 : index
    %4 = vector.load %arg3[%c48, %c0_2] : memref<88x32xf32, #tpu.memory_space<vmem>>, vector<32x32xf32>
    %5 = arith.truncf %4 : vector<32x32xf32> to vector<32x32xbf16>
    %c80 = arith.constant 80 : index
    %c0_3 = arith.constant 0 : index
    %6 = vector.load %arg3[%c80, %c0_3] : memref<88x32xf32, #tpu.memory_space<vmem>>, vector<8x32xf32>
    %7 = vector.extract_strided_slice %6 {offsets = [0, 0], sizes = [1, 32], strides = [1, 1]} : vector<8x32xf32> to vector<1x32xf32>
    %8 = vector.extract_strided_slice %6 {offsets = [1, 0], sizes = [1, 32], strides = [1, 1]} : vector<8x32xf32> to vector<1x32xf32>
    %9 = vector.extract_strided_slice %6 {offsets = [2, 0], sizes = [1, 32], strides = [1, 1]} : vector<8x32xf32> to vector<1x32xf32>
    %10 = vector.extract_strided_slice %6 {offsets = [3, 0], sizes = [1, 4], strides = [1, 1]} : vector<8x32xf32> to vector<1x4xf32>
    %c0_4 = arith.constant 0 : index
    %c0_5 = arith.constant 0 : index
    %11 = vector.load %arg1[%c0_4, %c0_5] : memref<64x16xf32, #tpu.memory_space<vmem>>, vector<64x16xf32>
    %12 = arith.truncf %11 : vector<64x16xf32> to vector<64x16xbf16>
    %cst = arith.constant dense<0.000000e+00> : vector<64x32xf32>
    %13 = tpu.matmul %12, %1, %cst {dimension_numbers = #tpu.dot_dimension_numbers<[1], [0], [0], [1], [0, 0, 1, 1], [], []>} : vector<64x16xbf16>, vector<16x32xbf16>, vector<64x32xf32> -> vector<64x32xf32>
    %14 = vector.broadcast %7 : vector<1x32xf32> to vector<64x32xf32>
    %15 = arith.addf %13, %14 : vector<64x32xf32>
    %cst_6 = arith.constant 0.000000e+00 : f32
    %16 = vector.broadcast %cst_6 : f32 to vector<64x32xf32>
    %17 = arith.maximumf %15, %16 : vector<64x32xf32>
    %18 = arith.truncf %17 : vector<64x32xf32> to vector<64x32xbf16>
    %cst_7 = arith.constant dense<0.000000e+00> : vector<64x32xf32>
    %19 = tpu.matmul %18, %3, %cst_7 {dimension_numbers = #tpu.dot_dimension_numbers<[1], [0], [0], [1], [0, 0, 1, 1], [], []>} : vector<64x32xbf16>, vector<32x32xbf16>, vector<64x32xf32> -> vector<64x32xf32>
    %20 = vector.broadcast %8 : vector<1x32xf32> to vector<64x32xf32>
    %21 = arith.addf %19, %20 : vector<64x32xf32>
    %cst_8 = arith.constant 0.000000e+00 : f32
    %22 = vector.broadcast %cst_8 : f32 to vector<64x32xf32>
    %23 = arith.maximumf %21, %22 : vector<64x32xf32>
    %24 = arith.truncf %23 : vector<64x32xf32> to vector<64x32xbf16>
    %cst_9 = arith.constant dense<0.000000e+00> : vector<64x32xf32>
    %25 = tpu.matmul %24, %5, %cst_9 {dimension_numbers = #tpu.dot_dimension_numbers<[1], [0], [0], [1], [0, 0, 1, 1], [], []>} : vector<64x32xbf16>, vector<32x32xbf16>, vector<64x32xf32> -> vector<64x32xf32>
    %26 = vector.broadcast %9 : vector<1x32xf32> to vector<64x32xf32>
    %27 = arith.addf %25, %26 : vector<64x32xf32>
    %28 = math.tanh %27 : vector<64x32xf32>
    %29 = vector.extract_strided_slice %28 {offsets = [0, 0], sizes = [64, 4], strides = [1, 1]} : vector<64x32xf32> to vector<64x4xf32>
    %cst_10 = arith.constant 0.000000e+00 : f32
    %30 = vector.broadcast %cst_10 : f32 to vector<1x4xf32>
    %31 = arith.subf %30, %10 : vector<1x4xf32>
    %32 = math.exp %31 : vector<1x4xf32>
    %c0_11 = arith.constant 0 : index
    %c0_12 = arith.constant 0 : index
    %33 = vector.load %arg2[%c0_11, %c0_12] : memref<64x4xf32, #tpu.memory_space<vmem>>, vector<64x4xf32>
    %34 = arith.subf %33, %29 : vector<64x4xf32>
    %35 = vector.broadcast %32 : vector<1x4xf32> to vector<64x4xf32>
    %36 = arith.mulf %34, %35 : vector<64x4xf32>
    %cst_13 = arith.constant -5.000000e-01 : f32
    %37 = vector.broadcast %cst_13 : f32 to vector<64x4xf32>
    %38 = arith.mulf %37, %36 : vector<64x4xf32>
    %39 = arith.mulf %38, %36 : vector<64x4xf32>
    %40 = vector.broadcast %10 : vector<1x4xf32> to vector<64x4xf32>
    %41 = arith.subf %39, %40 : vector<64x4xf32>
    %cst_14 = arith.constant 0.918938517 : f32
    %42 = vector.broadcast %cst_14 : f32 to vector<64x4xf32>
    %43 = arith.subf %41, %42 : vector<64x4xf32>
    %cst_15 = arith.constant dense<0.000000e+00> : vector<64xf32>
    %44 = vector.multi_reduction <add>, %43, %cst_15 [1] : vector<64x4xf32> to vector<64xf32>
    %45 = vector.shape_cast %44 : vector<64xf32> to vector<64x1xf32>
    %cst_16 = arith.constant 0.000000e+00 : f32
    %46 = vector.broadcast %cst_16 : f32 to vector<64x128xf32>
    %c0_17 = arith.constant 0 : index
    %c0_18 = arith.constant 0 : index
    %47 = vector.load %arg4[%c0_17, %c0_18] : memref<64x128xf32, #tpu.memory_space<vmem>>, vector<64x128xf32>
    tpu.vector_store %arg4[%c0_17, %c0_18], %46 {strides = array<i32>} : memref<64x128xf32, #tpu.memory_space<vmem>>, vector<64x128xf32>,
    %c0_19 = arith.constant 0 : index
    %c0_20 = arith.constant 0 : index
    %48 = vector.load %arg4[%c0_19, %c0_20] : memref<64x128xf32, #tpu.memory_space<vmem>>, vector<64x4xf32>
    tpu.vector_store %arg4[%c0_19, %c0_20], %29 {strides = array<i32>} : memref<64x128xf32, #tpu.memory_space<vmem>>, vector<64x4xf32>,
    %c0_21 = arith.constant 0 : index
    %c4 = arith.constant 4 : index
    %49 = vector.load %arg4[%c0_21, %c4] : memref<64x128xf32, #tpu.memory_space<vmem>>, vector<64x1xf32>
    tpu.vector_store %arg4[%c0_21, %c4], %45 {strides = array<i32>} : memref<64x128xf32, #tpu.memory_space<vmem>>, vector<64x1xf32>,
    return
  }
  func.func @transform_0(%arg0: i32) -> (i32, i32) {
    %c0_i32 = arith.constant 0 : i32
    %c0_i32_0 = arith.constant 0 : i32
    return %arg0, %c0_i32 : i32, i32
  }
  func.func @transform_1(%arg0: i32) -> (i32, i32) {
    %c0_i32 = arith.constant 0 : i32
    %c0_i32_0 = arith.constant 0 : i32
    return %arg0, %c0_i32 : i32, i32
  }
  func.func @transform_2(%arg0: i32) -> (i32, i32) {
    %c0_i32 = arith.constant 0 : i32
    %c0_i32_0 = arith.constant 0 : i32
    %c0_i32_1 = arith.constant 0 : i32
    return %c0_i32, %c0_i32_0 : i32, i32
  }
  func.func @transform_3(%arg0: i32) -> (i32, i32) {
    %c0_i32 = arith.constant 0 : i32
    %c0_i32_0 = arith.constant 0 : i32
    return %arg0, %c0_i32 : i32, i32
  }
}

</mosaic_0001>

<llo_original>
// kernel: actor_forward.1
$region0: #{actor_forward.1}
  #allocation0 [shape = 'u32[]', space=smem, size = 0x4, offset = 0x4, fixed_abs, tag = 'smem constant byte address 0x4 - core index']
  #allocation1 [shape = 'u32[72,128]{1,0:T(1,128)}', space=vmem, size = 0x9000, scoped, tag = 'internal scratch']
  %s0 = inlined_call_operand.vmem [shape: f32[256,16], index: 0, kind: input, shape index: {}]
  %s1 = inlined_call_operand.vmem [shape: f32[256,4], index: 1, kind: input, shape index: {}]
  %s2 = inlined_call_operand.vmem [shape: f32[88,32], index: 2, kind: input, shape index: {}]
  %s3 = inlined_call_operand.vmem [shape: f32[256,128], index: 3, kind: output, shape index: {}]
  %s4 = sld [smem:[#allocation0]]
  $region45: #{actor_forward.1} parent=0
    _
  %s6 = ssub.s32 1, %s4
  %s7 = scalar_select 0, %s6, %s4
  loop: start=0, step=1, limit=6
  $region2: #{actor_forward.1} parent=0 // loop_pre_header
    _
  $region3: #{actor_forward.1} parent=0 // loop_header
    %s9 = sphi 0, %s13
    %p10 = scmp.ge.s32.totalorder %s9, 6
    %s19 = sphi 0, %s21
    %s22 = sphi 0, %s19
    %s23 = sphi 0, %s22
    %s39 = sphi 0, %s23
    %s45 = sphi 0, %s47
    %s48 = sphi 0, %s45
    %s49 = sphi 0, %s48
    %s65 = sphi 0, %s49
    %s69 = sphi 0, %s69
    %s71 = sphi 0, %s69
    %s72 = sphi 0, %s71
    %s86 = sphi 0, %s72
    %s92 = sphi 0, %s94
    %s95 = sphi 0, %s92
    %s96 = sphi 0, %s95
    %s112 = sphi 0, %s96
  $region4: #{actor_forward.1} parent=0 // loop_header_branch
    %12 = sbr.rel (%p10) target = $region8
  $region5: #{actor_forward.1} parent=0 // loop_body
    %s14 = ssub.s32 %s9, 1
    %s15 = ssub.s32 %s9, 2
    %s16 = sadd.s32 %s9, 1
    %s17 = ssub.s32 %s9, %s16
    %p18 = scmp.eq.s32.totalorder %s17, 0
    %s20 = sadd.s32 %s19, 1
    %s21 = scalar_select %p18, %s19, %s20
    %p24 = pneg %p18
    %p25 = scmp.eq.s32.totalorder %s9, 3
    %p26 = por %p24, %p25
    %p27 = scmp.ne.s32.totalorder %s19, %s22
    %p28 = scmp.eq.s32.totalorder %s9, 0
    %p29 = por %p27, %p28
    %p30 = scmp.ne.s32.totalorder %s19, %s22
    %p31 = scmp.eq.s32.totalorder %s14, 3
    %p32 = por %p30, %p31
    %p33 = scmp.ne.s32.totalorder %s22, %s23
    %p34 = scmp.eq.s32.totalorder %s14, 0
    %p35 = por %p33, %p34
    %p36 = scmp.ne.s32.totalorder %s22, %s23
    %p37 = scmp.eq.s32.totalorder %s15, 3
    %p38 = por %p36, %p37
    %p40 = scmp.ne.s32.totalorder %s23, %s39
    %p41 = scmp.eq.s32.totalorder %s15, 0
    %p42 = por %p40, %p41
    %s43 = ssub.s32 %s9, %s16
    %p44 = scmp.eq.s32.totalorder %s43, 0
    %s46 = sadd.s32 %s45, 1
    %s47 = scalar_select %p44, %s45, %s46
    %p50 = pneg %p44
    %p51 = scmp.eq.s32.totalorder %s9, 3
    %p52 = por %p50, %p51
    %p53 = scmp.ne.s32.totalorder %s45, %s48
    %p54 = scmp.eq.s32.totalorder %s9, 0
    %p55 = por %p53, %p54
    %p56 = scmp.ne.s32.totalorder %s45, %s48
    %p57 = scmp.eq.s32.totalorder %s14, 3
    %p58 = por %p56, %p57
    %p59 = scmp.ne.s32.totalorder %s48, %s49
    %p60 = scmp.eq.s32.totalorder %s14, 0
    %p61 = por %p59, %p60
    %p62 = scmp.ne.s32.totalorder %s48, %s49
    %p63 = scmp.eq.s32.totalorder %s15, 3
    %p64 = por %p62, %p63
    %p66 = scmp.ne.s32.totalorder %s49, %s65
    %p67 = scmp.eq.s32.totalorder %s15, 0
    %p68 = por %p66, %p67
    %s70 = sadd.s32 %s69, 1
    %p73 = scmp.eq.s32.totalorder %s9, 3
    %p74 = scmp.ne.s32.totalorder %s69, %s71
    %p75 = scmp.eq.s32.totalorder %s9, 0
    %p76 = por %p74, %p75
    %p77 = scmp.ne.s32.totalorder %s69, %s71
    %p78 = scmp.eq.s32.totalorder %s14, 3
    %p79 = por %p77, %p78
    %p80 = scmp.ne.s32.totalorder %s71, %s72
    %p81 = scmp.eq.s32.totalorder %s14, 0
    %p82 = por %p80, %p81
    %p83 = scmp.ne.s32.totalorder %s71, %s72
    %p84 = scmp.eq.s32.totalorder %s15, 3
    %p85 = por %p83, %p84
    %p87 = scmp.ne.s32.totalorder %s72, %s86
    %p88 = scmp.eq.s32.totalorder %s15, 0
    %p89 = por %p87, %p88
    %s90 = ssub.s32 %s9, %s16
    %p91 = scmp.eq.s32.totalorder %s90, 0
    %s93 = sadd.s32 %s92, 1
    %s94 = scalar_select %p91, %s92, %s93
    %p97 = pneg %p91
    %p98 = scmp.eq.s32.totalorder %s9, 3
    %p99 = por %p97, %p98
    %p100 = scmp.ne.s32.totalorder %s92, %s95
    %p101 = scmp.eq.s32.totalorder %s9, 0
    %p102 = por %p100, %p101
    %p103 = scmp.ne.s32.totalorder %s92, %s95
    %p104 = scmp.eq.s32.totalorder %s14, 3
    %p105 = por %p103, %p104
    %p106 = scmp.ne.s32.totalorder %s95, %s96
    %p107 = scmp.eq.s32.totalorder %s14, 0
    %p108 = por %p106, %p107
    %p109 = scmp.ne.s32.totalorder %s95, %s96
    %p110 = scmp.eq.s32.totalorder %s15, 3
    %p111 = por %p109, %p110
    %p113 = scmp.ne.s32.totalorder %s96, %s112
    %p114 = scmp.eq.s32.totalorder %s15, 0
    %p115 = por %p113, %p114
    %p116 = scmp.le.s32.totalorder 1, %s9
    %p117 = scmp.lt.s32.totalorder %s9, 5
    %p118 = pnand %p116, %p117
    %p119 = pneg %p118
    // Predicated region
    $region9: #{actor_forward.1} parent=5 // pred_check
      _
    $region10: #{actor_forward.1} parent=5 // pred_check_branch
      %121 = sbr.rel (%p118) target = $region12
    $region11: #{actor_forward.1} parent=5 // pred_region
      %s122 = ssub.s32 %s9, 1
      // Predicated region
      $region13: #{actor_forward.1} parent=11 // pred_check
        %p123 = pneg %p82
      $region14: #{actor_forward.1} parent=11 // pred_check_branch
        %125 = sbr.rel (%p123) target = $region16
      $region15: #{actor_forward.1} parent=11 // pred_region
        _
      $region16: #{actor_forward.1} parent=11 // pred_fallthru
        _
    $region12: #{actor_forward.1} parent=5 // pred_fallthru
      _
    %p126 = scmp.lt.s32.totalorder %s9, 4
    // Predicated region
    $region17: #{actor_forward.1} parent=5 // pred_check
      %p127 = pneg %p126
    $region18: #{actor_forward.1} parent=5 // pred_check_branch
      %129 = sbr.rel (%p127) target = $region20
    $region19: #{actor_forward.1} parent=5 // pred_region
      // Predicated region
      $region21: #{actor_forward.1} parent=19 // pred_check
        %p130 = pneg %p29
      $region22: #{actor_forward.1} parent=19 // pred_check_branch
        %132 = sbr.rel (%p130) target = $region24
      $region23: #{actor_forward.1} parent=19 // pred_region
        %s133 = smul.u32 8, %s9
        %p134 = scmp.lt.s32.totalorder %s133, 31
        %s135 = scalar_select %p134, %s133, 31
        %s136 = smul.addr %s135, 8
        %s137 = scalar_lea.vmem %s0, %s136
        %s138 = smul.u32 8, %s9
      $region24: #{actor_forward.1} parent=19 // pred_fallthru
        _
      // Predicated region
      $region25: #{actor_forward.1} parent=19 // pred_check
        %p139 = pneg %p55
      $region26: #{actor_forward.1} parent=19 // pred_check_branch
        %141 = sbr.rel (%p139) target = $region28
      $region27: #{actor_forward.1} parent=19 // pred_region
        %s142 = smul.u32 8, %s9
        %p143 = scmp.lt.s32.totalorder %s142, 31
        %s144 = scalar_select %p143, %s142, 31
        %s145 = smul.addr %s144, 8
        %s146 = scalar_lea.vmem %s1, %s145
        %s147 = smul.u32 8, %s9
      $region28: #{actor_forward.1} parent=19 // pred_fallthru
        _
    $region20: #{actor_forward.1} parent=5 // pred_fallthru
      _
    %p148 = scmp.le.s32.totalorder 1, %s9
    %p149 = scmp.lt.s32.totalorder %s9, 5
    %p150 = pnand %p148, %p149
    %p151 = pneg %p150
    // Predicated region
    $region29: #{actor_forward.1} parent=5 // pred_check
      _
    $region30: #{actor_forward.1} parent=5 // pred_check_branch
      %153 = sbr.rel (%p150) target = $region32
    $region31: #{actor_forward.1} parent=5 // pred_region
      %s154 = ssub.s32 %s9, 1
      %s155 = smul.u32 8, %s14
      %p156 = scmp.lt.s32.totalorder %s155, 31
      %s157 = scalar_select %p156, %s155, 31
      %s158 = smul.addr %s157, 8
      %s159 = scalar_lea.vmem %s0, %s158
      %p160 = pneg %p35
      %p161 = pneg %p32
      %s162 = smul.u32 8, %s14
      %p163 = scmp.lt.s32.totalorder %s162, 31
      %s164 = scalar_select %p163, %s162, 31
      %s165 = smul.addr %s164, 8
      %s166 = scalar_lea.vmem %s1, %s165
      %p167 = pneg %p61
      %p168 = pneg %p58
      %p169 = pneg %p82
      %p170 = pneg %p79
      %p171 = pneg %p108
      %p172 = pneg %p105
      %s173 = smul.u32 8, %s14
      %p174 = scmp.lt.s32.totalorder %s173, 31
      %s175 = scalar_select %p174, %s173, 31
      %s176 = smul.addr %s175, 8
      %s177 = scalar_lea.vmem %s3, %s176
      %s178 = smul.u32 8, %s14
      %p179 = scmp.lt.s32.totalorder %s178, 31
      %s180 = scalar_select %p179, %s178, 31
      %s181 = smul.addr %s180, 8
      %s182 = scalar_lea.vmem %s0, %s181
      %s183 = smul.u32 8, %s14
      %s184 = smul.u32 8, %s14
      %p185 = scmp.lt.s32.totalorder %s184, 31
      %s186 = scalar_select %p185, %s184, 31
      %s187 = smul.addr %s186, 8
      %s188 = scalar_lea.vmem %s1, %s187
      %s189 = smul.u32 8, %s14
      %s190 = smul.u32 8, %s14
      %p191 = scmp.lt.s32.totalorder %s190, 31
      %s192 = scalar_select %p191, %s190, 31
      %s193 = smul.addr %s192, 8
      %s194 = scalar_lea.vmem %s3, %s193
      %s195 = smul.u32 8, %s14
      %v197 = vld [vmem:[%s2] sm:$0xff]
      %v198 = vld [vmem:[%s2 + $0x8] sm:$0xff]
      %v199 = vpack.c.bf16 %v198, %v197
      %v200 = vld [vmem:[%s2 + $0x10] sm:$0xff]
      %v201 = vld [vmem:[%s2 + $0x18] sm:$0xff]
      %v202 = vld [vmem:[%s2 + $0x20] sm:$0xff]
      %v203 = vld [vmem:[%s2 + $0x28] sm:$0xff]
      %v204 = vpack.c.bf16 %v201, %v200
      %v205 = vpack.c.bf16 %v203, %v202
      %v206 = vld [vmem:[%s2 + $0x30] sm:$0xff]
      %v207 = vld [vmem:[%s2 + $0x38] sm:$0xff]
      %v208 = vld [vmem:[%s2 + $0x40] sm:$0xff]
      %v209 = vld [vmem:[%s2 + $0x48] sm:$0xff]
      %v210 = vpack.c.bf16 %v207, %v206
      %v211 = vpack.c.bf16 %v209, %v208
      %v212 = vld [vmem:[%s2 + $0x50] sm:$0xff]
      %v213 = vld [vmem:[%s182] sm:$0xff]
      %v214 = vld [vmem:[%s182 + $0x8] sm:$0xff]
      %v215 = vld [vmem:[%s182 + $0x10] sm:$0xff]
      %v216 = vld [vmem:[%s182 + $0x18] sm:$0xff]
      %v217 = vld [vmem:[%s182 + $0x20] sm:$0xff]
      %v218 = vld [vmem:[%s182 + $0x28] sm:$0xff]
      %v219 = vld [vmem:[%s182 + $0x30] sm:$0xff]
      %v220 = vld [vmem:[%s182 + $0x38] sm:$0xff]
      %v221 = vpack.c.bf16 %v214, %v213
      %v222 = vpack.c.bf16 %v216, %v215
      %v223 = vpack.c.bf16 %v218, %v217
      %v224 = vpack.c.bf16 %v220, %v219
      %v225 = vperm.slane %v212, 0
      %vm226 = vcmask 130048
      %v228 = vsel %vm226, %v221, 0
      %v231 = vsel %vm226, %v222, 0
      %v234 = vsel %vm226, %v223, 0
      %v237 = vsel %vm226, %v224, 0
      %239 = vmatpush.bf16.msra.mxu0 0
      %240 = vmatpush.bf16.msra.mxu0 0
      %241 = vmatpush.bf16.msra.mxu0 0
      %242 = vmatpush.bf16.msra.mxu0 0
      %243 = vmatpush.bf16.msra.mxu0 0
      %244 = vmatpush.bf16.msra.mxu0 0
      %245 = vmatpush.bf16.msra.mxu0 0
      %246 = vmatpush.bf16.msra.mxu0 %v199
      %247 = vmatmul.bf16.gmra.mxu0 %v228
      %v248 = vpop.f32.mrf.mxu0
      %v249 = vadd.f32 %v225, %v248
      %v250 = vpop.f32.mrf.mxu0
      %v251 = vadd.f32 %v225, %v250
      %252 = vmatmul.bf16.gmra.mxu0 %v231
      %v253 = vpop.f32.mrf.mxu0
      %v254 = vadd.f32 %v225, %v253
      %v255 = vpop.f32.mrf.mxu0
      %v256 = vadd.f32 %v225, %v255
      %257 = vmatmul.bf16.gmra.mxu0 %v234
      %v258 = vpop.f32.mrf.mxu0
      %v259 = vadd.f32 %v225, %v258
      %v260 = vpop.f32.mrf.mxu0
      %v261 = vadd.f32 %v225, %v260
      %262 = vmatmul.bf16.gmra.mxu0 %v237
      %v263 = vpop.f32.mrf.mxu0
      %v264 = vadd.f32 %v225, %v263
      %v265 = vpop.f32.mrf.mxu0
      %v266 = vadd.f32 %v225, %v265
      %267 = vdwg.mxu0
      %v268 = vmax.f32 %v249, 0.0
      %v269 = vmax.f32 %v251, 0.0
      %v270 = vmax.f32 %v254, 0.0
      %v271 = vmax.f32 %v256, 0.0
      %v272 = vmax.f32 %v259, 0.0
      %v273 = vmax.f32 %v261, 0.0
      %v274 = vmax.f32 %v264, 0.0
      %v275 = vmax.f32 %v266, 0.0
      %v276 = vpack.c.bf16 %v269, %v268
      %v277 = vpack.c.bf16 %v271, %v270
      %v278 = vpack.c.bf16 %v273, %v272
      %v279 = vpack.c.bf16 %v275, %v274
      %v280 = vperm.slane %v212, 1
      %vm281 = vcmask 261120
      %v283 = vsel %vm281, %v276, 0
      %v286 = vsel %vm281, %v277, 0
      %v289 = vsel %vm281, %v278, 0
      %v292 = vsel %vm281, %v279, 0
      %294 = vmatpush.bf16.msra.mxu0 0
      %295 = vmatpush.bf16.msra.mxu0 0
      %296 = vmatpush.bf16.msra.mxu0 0
      %297 = vmatpush.bf16.msra.mxu0 0
      %298 = vmatpush.bf16.msra.mxu0 0
      %299 = vmatpush.bf16.msra.mxu0 0
      %300 = vmatpush.bf16.msra.mxu0 %v205
      %301 = vmatpush.bf16.msra.mxu0 %v204
      %302 = vmatmul.bf16.gmra.mxu0 %v283
      %v303 = vpop.f32.mrf.mxu0
      %v304 = vadd.f32 %v280, %v303
      %v305 = vpop.f32.mrf.mxu0
      %v306 = vadd.f32 %v280, %v305
      %307 = vmatmul.bf16.gmra.mxu0 %v286
      %v308 = vpop.f32.mrf.mxu0
      %v309 = vadd.f32 %v280, %v308
      %v310 = vpop.f32.mrf.mxu0
      %v311 = vadd.f32 %v280, %v310
      %312 = vmatmul.bf16.gmra.mxu0 %v289
      %v313 = vpop.f32.mrf.mxu0
      %v314 = vadd.f32 %v280, %v313
      %v315 = vpop.f32.mrf.mxu0
      %v316 = vadd.f32 %v280, %v315
      %317 = vmatmul.bf16.gmra.mxu0 %v292
      %v318 = vpop.f32.mrf.mxu0
      %v319 = vadd.f32 %v280, %v318
      %v320 = vpop.f32.mrf.mxu0
      %v321 = vadd.f32 %v280, %v320
      %322 = vdwg.mxu0
      %v323 = vmax.f32 %v304, 0.0
      %v324 = vmax.f32 %v306, 0.0
      %v325 = vmax.f32 %v309, 0.0
      %v326 = vmax.f32 %v311, 0.0
      %v327 = vmax.f32 %v314, 0.0
      %v328 = vmax.f32 %v316, 0.0
      %v329 = vmax.f32 %v319, 0.0
      %v330 = vmax.f32 %v321, 0.0
      %v331 = vpack.c.bf16 %v324, %v323
      %v332 = vpack.c.bf16 %v326, %v325
      %v333 = vpack.c.bf16 %v328, %v327
      %v334 = vpack.c.bf16 %v330, %v329
      %v335 = vperm.slane %v212, 2
      %v337 = vsel %vm281, %v331, 0
      %v340 = vsel %vm281, %v332, 0
      %v343 = vsel %vm281, %v333, 0
      %v346 = vsel %vm281, %v334, 0
      %348 = vmatpush.bf16.msra.mxu0 0
      %349 = vmatpush.bf16.msra.mxu0 0
      %350 = vmatpush.bf16.msra.mxu0 0
      %351 = vmatpush.bf16.msra.mxu0 0
      %352 = vmatpush.bf16.msra.mxu0 0
      %353 = vmatpush.bf16.msra.mxu0 0
      %354 = vmatpush.bf16.msra.mxu0 %v211
      %355 = vmatpush.bf16.msra.mxu0 %v210
      %356 = vmatmul.bf16.gmra.mxu0 %v337
      %v357 = vpop.f32.mrf.mxu0
      %v358 = vadd.f32 %v335, %v357
      %v359 = vpop.f32.mrf.mxu0
      %v360 = vadd.f32 %v335, %v359
      %361 = vmatmul.bf16.gmra.mxu0 %v340
      %v362 = vpop.f32.mrf.mxu0
      %v363 = vadd.f32 %v335, %v362
      %v364 = vpop.f32.mrf.mxu0
      %v365 = vadd.f32 %v335, %v364
      %366 = vmatmul.bf16.gmra.mxu0 %v343
      %v367 = vpop.f32.mrf.mxu0
      %v368 = vadd.f32 %v335, %v367
      %v369 = vpop.f32.mrf.mxu0
      %v370 = vadd.f32 %v335, %v369
      %371 = vmatmul.bf16.gmra.mxu0 %v346
      %v372 = vpop.f32.mrf.mxu0
      %v373 = vadd.f32 %v335, %v372
      %v374 = vpop.f32.mrf.mxu0
      %v375 = vadd.f32 %v335, %v374
      %376 = vdwg.mxu0
      %v377 = vtanh.pop %v358
      %v378 = vtanh.pop %v360
      %v379 = vtanh.pop %v363
      %v380 = vtanh.pop %v365
      %v381 = vtanh.pop %v368
      %v382 = vtanh.pop %v370
      %v383 = vtanh.pop %v373
      %v384 = vtanh.pop %v375
      %v385 = vsub.f32 0.0, %v212
      %v386 = vmul.f32 %v385, 1.442695
      %v387 = vpow.pop %v386
      %v388 = vld [vmem:[%s188] sm:$0xff]
      %v389 = vld [vmem:[%s188 + $0x8] sm:$0xff]
      %v390 = vld [vmem:[%s188 + $0x10] sm:$0xff]
      %v391 = vld [vmem:[%s188 + $0x18] sm:$0xff]
      %v392 = vld [vmem:[%s188 + $0x20] sm:$0xff]
      %v393 = vld [vmem:[%s188 + $0x28] sm:$0xff]
      %v394 = vld [vmem:[%s188 + $0x30] sm:$0xff]
      %v395 = vld [vmem:[%s188 + $0x38] sm:$0xff]
      %v396 = vsub.f32 %v388, %v377
      %v397 = vsub.f32 %v389, %v378
      %v398 = vsub.f32 %v390, %v379
      %v399 = vsub.f32 %v391, %v380
      %v400 = vsub.f32 %v392, %v381
      %v401 = vsub.f32 %v393, %v382
      %v402 = vsub.f32 %v394, %v383
      %v403 = vsub.f32 %v395, %v384
      %v404 = vperm.slane %v387, 3
      %v405 = vmul.f32 %v396, %v404
      %v406 = vmul.f32 %v397, %v404
      %v407 = vmul.f32 %v398, %v404
      %v408 = vmul.f32 %v399, %v404
      %v409 = vmul.f32 %v400, %v404
      %v410 = vmul.f32 %v401, %v404
      %v411 = vmul.f32 %v402, %v404
      %v412 = vmul.f32 %v403, %v404
      %v413 = vmul.f32 %v405, -0.5
      %v414 = vmul.f32 %v406, -0.5
      %v415 = vmul.f32 %v407, -0.5
      %v416 = vmul.f32 %v408, -0.5
      %v417 = vmul.f32 %v409, -0.5
      %v418 = vmul.f32 %v410, -0.5
      %v419 = vmul.f32 %v411, -0.5
      %v420 = vmul.f32 %v412, -0.5
      %v421 = vmul.f32 %v413, %v405
      %v422 = vmul.f32 %v414, %v406
      %v423 = vmul.f32 %v415, %v407
      %v424 = vmul.f32 %v416, %v408
      %v425 = vmul.f32 %v417, %v409
      %v426 = vmul.f32 %v418, %v410
      %v427 = vmul.f32 %v419, %v411
      %v428 = vmul.f32 %v420, %v412
      %v429 = vperm.slane %v212, 3
      %v430 = vsub.f32 %v421, %v429
      %v431 = vsub.f32 %v422, %v429
      %v432 = vsub.f32 %v423, %v429
      %v433 = vsub.f32 %v424, %v429
      %v434 = vsub.f32 %v425, %v429
      %v435 = vsub.f32 %v426, %v429
      %v436 = vsub.f32 %v427, %v429
      %v437 = vsub.f32 %v428, %v429
      %v438 = vsub.f32 %v430, 0.9189385
      %v439 = vsub.f32 %v431, 0.9189385
      %v440 = vsub.f32 %v432, 0.9189385
      %v441 = vsub.f32 %v433, 0.9189385
      %v442 = vsub.f32 %v434, 0.9189385
      %v443 = vsub.f32 %v435, 0.9189385
      %v444 = vsub.f32 %v436, 0.9189385
      %v445 = vsub.f32 %v437, 0.9189385
      %vm446 = vcmask 31744
      %v447 = vsel %vm446, %v438, 0.0
      %448 = vadd.xlane.f32.xlu0 %v447
      %v449 = vpop.xlane.xlu0 %448
      %v450 = vsel %vm446, %v439, 0.0
      %451 = vadd.xlane.f32.xlu0 %v450
      %v452 = vpop.xlane.xlu0 %451
      %v453 = vsel %vm446, %v440, 0.0
      %454 = vadd.xlane.f32.xlu0 %v453
      %v455 = vpop.xlane.xlu0 %454
      %v456 = vsel %vm446, %v441, 0.0
      %457 = vadd.xlane.f32.xlu0 %v456
      %v458 = vpop.xlane.xlu0 %457
      %v459 = vsel %vm446, %v442, 0.0
      %460 = vadd.xlane.f32.xlu0 %v459
      %v461 = vpop.xlane.xlu0 %460
      %v462 = vsel %vm446, %v443, 0.0
      %463 = vadd.xlane.f32.xlu0 %v462
      %v464 = vpop.xlane.xlu0 %463
      %v465 = vsel %vm446, %v444, 0.0
      %466 = vadd.xlane.f32.xlu0 %v465
      %v467 = vpop.xlane.xlu0 %466
      %v468 = vsel %vm446, %v445, 0.0
      %469 = vadd.xlane.f32.xlu0 %v468
      %v470 = vpop.xlane.xlu0 %469
      %471 = vst [vmem:[%s194] sm:$0xff] 0.0
      %472 = vst [vmem:[%s194 + $0x8] sm:$0xff] 0.0
      %473 = vst [vmem:[%s194 + $0x10] sm:$0xff] 0.0
      %474 = vst [vmem:[%s194 + $0x18] sm:$0xff] 0.0
      %475 = vst [vmem:[%s194 + $0x20] sm:$0xff] 0.0
      %476 = vst [vmem:[%s194 + $0x28] sm:$0xff] 0.0
      %477 = vst [vmem:[%s194 + $0x30] sm:$0xff] 0.0
      %478 = vst [vmem:[%s194 + $0x38] sm:$0xff] 0.0
      %479 = vst.msk [vmem:[%s194] sm:$0xff] %vm446, %v377
      %480 = vst.msk [vmem:[%s194 + $0x8] sm:$0xff] %vm446, %v378
      %481 = vst.msk [vmem:[%s194 + $0x10] sm:$0xff] %vm446, %v379
      %482 = vst.msk [vmem:[%s194 + $0x18] sm:$0xff] %vm446, %v380
      %483 = vst.msk [vmem:[%s194 + $0x20] sm:$0xff] %vm446, %v381
      %484 = vst.msk [vmem:[%s194 + $0x28] sm:$0xff] %vm446, %v382
      %485 = vst.msk [vmem:[%s194 + $0x30] sm:$0xff] %vm446, %v383
      %486 = vst.msk [vmem:[%s194 + $0x38] sm:$0xff] %vm446, %v384
      %vm487 = vcmask 39968
      %488 = vst.msk [vmem:[%s194] sm:$0xff] %vm487, %v449
      %489 = vst.msk [vmem:[%s194 + $0x8] sm:$0xff] %vm487, %v452
      %490 = vst.msk [vmem:[%s194 + $0x10] sm:$0xff] %vm487, %v455
      %491 = vst.msk [vmem:[%s194 + $0x18] sm:$0xff] %vm487, %v458
      %492 = vst.msk [vmem:[%s194 + $0x20] sm:$0xff] %vm487, %v461
      %493 = vst.msk [vmem:[%s194 + $0x28] sm:$0xff] %vm487, %v464
      %494 = vst.msk [vmem:[%s194 + $0x30] sm:$0xff] %vm487, %v467
      %495 = vst.msk [vmem:[%s194 + $0x38] sm:$0xff] %vm487, %v470
      %s496 = smul.u32 8, %s14
      %p497 = scmp.lt.s32.totalorder %s496, 31
      %s498 = scalar_select %p497, %s496, 31
      %s499 = smul.addr %s498, 8
      %s500 = scalar_lea.vmem %s3, %s499
      // Predicated region
      $region33: #{actor_forward.1} parent=31 // pred_check
        %p501 = pneg %p105
      $region34: #{actor_forward.1} parent=31 // pred_check_branch
        %503 = sbr.rel (%p501) target = $region36
      $region35: #{actor_forward.1} parent=31 // pred_region
        %s504 = smul.u32 8, %s14
      $region36: #{actor_forward.1} parent=31 // pred_fallthru
        _
    $region32: #{actor_forward.1} parent=5 // pred_fallthru
      _
    %p505 = scmp.le.s32.totalorder 2, %s9
    // Predicated region
    $region37: #{actor_forward.1} parent=5 // pred_check
      %p506 = pneg %p505
    $region38: #{actor_forward.1} parent=5 // pred_check_branch
      %508 = sbr.rel (%p506) target = $region40
    $region39: #{actor_forward.1} parent=5 // pred_region
      %s509 = ssub.s32 %s9, 2
      // Predicated region
      $region41: #{actor_forward.1} parent=39 // pred_check
        %p510 = pneg %p111
      $region42: #{actor_forward.1} parent=39 // pred_check_branch
        %512 = sbr.rel (%p510) target = $region44
      $region43: #{actor_forward.1} parent=39 // pred_region
        %s513 = smul.u32 8, %s15
        %p514 = scmp.lt.s32.totalorder %s513, 31
        %s515 = scalar_select %p514, %s513, 31
        %s516 = smul.addr %s515, 8
        %s517 = scalar_lea.vmem %s3, %s516
      $region44: #{actor_forward.1} parent=39 // pred_fallthru
        _
    $region40: #{actor_forward.1} parent=5 // pred_fallthru
      _
  $region6: #{actor_forward.1} parent=0 // loop_footer
    %s13 = sadd.s32 1, %s9
  $region7: #{actor_forward.1} parent=0 // loop_footer_branch
    %8 = sbr.rel target = $region3
  $region8: #{actor_forward.1} parent=0 // loop_exit
    _

</llo_original>
